<compile_context>
chip_gen: v6e
topology: v6e:2x2x1
jax: 0.10.0
libtpu: 0.0.40
codegen_flags: <defaults>
</compile_context>

<pallas_src>
import functools

import jax
import jax.numpy as jnp
from jax.experimental import pallas as pl
from jax.experimental.pallas import tpu as pltpu

LN_EPS = 1e-10                      # matches the module's layer_norm_eps default
_VMEM_LIMIT_BYTES = 48 << 20        # fits v7x (64 MiB physical) with headroom
_VMEM_TILE_BUDGET = 32 << 20        # budget used when choosing the row tile


def _bert_residual_output_kernel(x_ref, res_ref, w_ref, b_ref, g_ref, beta_ref,
                                 o_ref, *, h_real, eps):
    # x_ref:    (TM, Hp) hidden_states tile
    # res_ref:  (TM, Hp) residual (input_tensor) tile
    # w_ref:    (Hp, Hp) dense weight, pre-transposed to (in, out), zero-padded
    # b_ref:    (1, Hp)  dense bias (zero-padded)
    # g_ref:    (1, Hp)  LayerNorm gamma (zero-padded)
    # beta_ref: (1, Hp)  LayerNorm beta (zero-padded)

    # Dense: MXU matmul in the operands' native dtype, f32 accumulation.
    h = jnp.dot(x_ref[...], w_ref[...], preferred_element_type=jnp.float32)

    # Dropout: identity in eval mode.

    # Bias + residual add (padded lanes stay exactly zero).
    y = h + res_ref[...].astype(jnp.float32) + b_ref[...].astype(jnp.float32)

    hp = y.shape[-1]
    inv_h = 1.0 / float(h_real)

    # LayerNorm over the real hidden width (padded lanes contribute 0).
    mean = jnp.sum(y, axis=-1, keepdims=True) * inv_h
    centered = y - mean
    if hp != h_real:
        col = jax.lax.broadcasted_iota(jnp.int32, y.shape, 1)
        centered = jnp.where(col < h_real, centered, 0.0)
    var = jnp.sum(centered * centered, axis=-1, keepdims=True) * inv_h
    inv_std = jax.lax.rsqrt(var + eps)          # EUP op — off the VALU critical path

    out = (centered * inv_std) * g_ref[...].astype(jnp.float32) \
          + beta_ref[...].astype(jnp.float32)
    o_ref[...] = out.astype(o_ref.dtype)


def _pick_tm(rows, hp, dtype_bytes, budget=_VMEM_TILE_BUDGET):
    """Largest row tile keeping resident weight + double-buffered streams in budget."""
    fixed = 2 * hp * hp * dtype_bytes + 8 * hp * dtype_bytes     # weight (2 bufs) + params
    per_row = hp * (3 * 2 * dtype_bytes + 3 * 4)                 # x/res/out dbl-buf + f32 temps
    tm = (budget - fixed) // per_row
    tm = int(max(8, min(512, tm)))              # 512 is already at the HBM roofline knee
    if tm >= 128:
        tm = (tm // 128) * 128                  # full MXU waves
    else:
        tm = (tm // 8) * 8
    if rows < tm:
        tm = ((rows + 7) // 8) * 8              # small problem: single tile
    return max(tm, 8)


@functools.partial(jax.jit, static_argnames=("eps",))
def bert_residual_output(hidden_states, input_tensor, w, b, gamma, beta,
                         *, eps=LN_EPS):
    """hidden_states, input_tensor: (B, S, H). w: (H, H) PyTorch Linear weight
    (out, in). b, gamma, beta: (H,)."""
    B, S, H = hidden_states.shape
    rows = B * S
    dtype = hidden_states.dtype
    dbytes = jnp.dtype(dtype).itemsize

    # Lane-dense hidden width and row tiling.
    Hp = max(128, ((H + 127) // 128) * 128)
    TM = _pick_tm(rows, Hp, dbytes)
    rows_p = ((rows + TM - 1) // TM) * TM

    x2d = hidden_states.reshape(rows, H)
    r2d = input_tensor.reshape(rows, H)
    # (out, in) -> (in, out). In production, pre-transpose once at weight-load
    # time; under jit this is a single fused XLA op per compile, not per tile.
    w_t = w.T

    if Hp != H or rows_p != rows:
        x2d = jnp.pad(x2d, ((0, rows_p - rows), (0, Hp - H)))
        r2d = jnp.pad(r2d, ((0, rows_p - rows), (0, Hp - H)))
        w_t = jnp.pad(w_t, ((0, Hp - H), (0, Hp - H)))
        b_p = jnp.pad(b, (0, Hp - H))
        g_p = jnp.pad(gamma, (0, Hp - H))
        be_p = jnp.pad(beta, (0, Hp - H))
    else:
        b_p, g_p, be_p = b, gamma, beta

    b2d = b_p.reshape(1, Hp)
    g2d = g_p.reshape(1, Hp)
    beta2d = be_p.reshape(1, Hp)

    grid = (rows_p // TM,)
    kernel = functools.partial(_bert_residual_output_kernel, h_real=H, eps=eps)

    cost = pl.CostEstimate(
        flops=2 * rows_p * Hp * Hp,
        transcendentals=rows_p,                                   # one rsqrt per row
        bytes_accessed=(3 * rows_p * Hp + Hp * Hp + 3 * Hp) * dbytes,
    )

    out2d = pl.pallas_call(
        kernel,
        out_shape=jax.ShapeDtypeStruct((rows_p, Hp), dtype),
        grid=grid,
        in_specs=[
            pl.BlockSpec((TM, Hp), lambda i: (i, 0)),    # hidden_states tile
            pl.BlockSpec((TM, Hp), lambda i: (i, 0)),    # residual tile
            pl.BlockSpec((Hp, Hp), lambda i: (0, 0)),    # weight: grid-invariant
            pl.BlockSpec((1, Hp), lambda i: (0, 0)),     # bias
            pl.BlockSpec((1, Hp), lambda i: (0, 0)),     # gamma
            pl.BlockSpec((1, Hp), lambda i: (0, 0)),     # beta
        ],
        out_specs=pl.BlockSpec((TM, Hp), lambda i: (i, 0)),
        compiler_params=pltpu.CompilerParams(
            dimension_semantics=("parallel",),
            vmem_limit_bytes=_VMEM_LIMIT_BYTES,
        ),
        cost_estimate=cost,
    )(x2d, r2d, w_t, b2d, g2d, beta2d)

    return out2d[:rows, :H].reshape(B, S, H)


def _reference(hidden_states, input_tensor, w, b, gamma, beta, eps=LN_EPS):
    h = jnp.einsum("bsh,oh->bso", hidden_states, w) + b
    y = h + input_tensor
    mean = jnp.mean(y, axis=-1, keepdims=True)
    var = jnp.mean((y - mean) ** 2, axis=-1, keepdims=True)
    norm = (y - mean) * jax.lax.rsqrt(var + eps)
    return norm * gamma + beta


if __name__ == "__main__":
    B, S, H = 2, 8, 32

    key = jax.random.PRNGKey(0)
    k_x, k_r, k_w, k_b, k_g, k_be = jax.random.split(key, 6)

    hidden_states = jax.random.normal(k_x, (B, S, H), dtype=jnp.float32)
    input_tensor = jax.random.normal(k_r, (B, S, H), dtype=jnp.float32)

    bound = 1.0 / (H ** 0.5)
    w = jax.random.uniform(k_w, (H, H), minval=-bound, maxval=bound,
                           dtype=jnp.float32)          # (out, in) like nn.Linear
    b = jax.random.uniform(k_b, (H,), minval=-bound, maxval=bound,
                           dtype=jnp.float32)
    gamma = jnp.ones((H,), jnp.float32) + 0.01 * jax.random.normal(k_g, (H,))
    beta = 0.01 * jax.random.normal(k_be, (H,), dtype=jnp.float32)

    out = bert_residual_output(hidden_states, input_tensor, w, b, gamma, beta)
    out = jax.block_until_ready(out)

    ref = _reference(hidden_states, input_tensor, w, b, gamma, beta)
    assert out.shape == (B, S, H)
    assert jnp.allclose(out, ref, atol=1e-4, rtol=1e-4), "mismatch vs reference"

    print("KERNEL_OK")
</pallas_src>

<mosaic_0001>
module attributes {stable_mosaic.version = 11 : i64} {
  func.func @_bert_residual_output_kernel(%arg0: i32, %arg1: memref<16x128xf32, #tpu.memory_space<vmem>>, %arg2: memref<16x128xf32, #tpu.memory_space<vmem>>, %arg3: memref<128x128xf32, #tpu.memory_space<vmem>>, %arg4: memref<1x128xf32, #tpu.memory_space<vmem>>, %arg5: memref<1x128xf32, #tpu.memory_space<vmem>>, %arg6: memref<1x128xf32, #tpu.memory_space<vmem>>, %arg7: memref<16x128xf32, #tpu.memory_space<vmem>>) attributes {dimension_semantics = [#tpu.dimension_semantics<parallel>], iteration_bounds = array<i64: 1>, scalar_prefetch = 0 : i64, scratch_operands = 0 : i64, tpu.core_type = #tpu.core_type<tc>, window_params = [{transform_indices = @transform_0, window_bounds = array<i64: 16, 128>}, {transform_indices = @transform_1, window_bounds = array<i64: 16, 128>}, {pipeline_mode = #tpu.pipeline_mode<synchronous>, transform_indices = @transform_2, window_bounds = array<i64: 128, 128>}, {pipeline_mode = #tpu.pipeline_mode<synchronous>, transform_indices = @transform_3, window_bounds = array<i64: 1, 128>}, {pipeline_mode = #tpu.pipeline_mode<synchronous>, transform_indices = @transform_4, window_bounds = array<i64: 1, 128>}, {pipeline_mode = #tpu.pipeline_mode<synchronous>, transform_indices = @transform_5, window_bounds = array<i64: 1, 128>}, {transform_indices = @transform_6, window_bounds = array<i64: 16, 128>}]} {
    %c0 = arith.constant 0 : index
    %c0_0 = arith.constant 0 : index
    %0 = vector.load %arg1[%c0, %c0_0] : memref<16x128xf32, #tpu.memory_space<vmem>>, vector<16x128xf32>
    %c0_1 = arith.constant 0 : index
    %c0_2 = arith.constant 0 : index
    %1 = vector.load %arg3[%c0_1, %c0_2] : memref<128x128xf32, #tpu.memory_space<vmem>>, vector<128x128xf32>
    %cst = arith.constant dense<0.000000e+00> : vector<16x128xf32>
    %2 = tpu.matmul %0, %1, %cst {dimension_numbers = #tpu.dot_dimension_numbers<[1], [0], [0], [1], [0, 0, 1, 1], [], []>} : vector<16x128xf32>, vector<128x128xf32>, vector<16x128xf32> -> vector<16x128xf32>
    %c0_3 = arith.constant 0 : index
    %c0_4 = arith.constant 0 : index
    %3 = vector.load %arg2[%c0_3, %c0_4] : memref<16x128xf32, #tpu.memory_space<vmem>>, vector<16x128xf32>
    %4 = arith.addf %2, %3 : vector<16x128xf32>
    %c0_5 = arith.constant 0 : index
    %c0_6 = arith.constant 0 : index
    %5 = vector.load %arg4[%c0_5, %c0_6] : memref<1x128xf32, #tpu.memory_space<vmem>>, vector<1x128xf32>
    %6 = vector.broadcast %5 : vector<1x128xf32> to vector<16x128xf32>
    %7 = arith.addf %4, %6 : vector<16x128xf32>
    %cst_7 = arith.constant dense<0.000000e+00> : vector<16xf32>
    %8 = vector.multi_reduction <add>, %7, %cst_7 [1] : vector<16x128xf32> to vector<16xf32>
    %9 = vector.shape_cast %8 : vector<16xf32> to vector<16x1xf32>
    %cst_8 = arith.constant 3.125000e-02 : f32
    %10 = vector.broadcast %cst_8 : f32 to vector<16x1xf32>
    %11 = arith.mulf %9, %10 : vector<16x1xf32>
    %12 = vector.broadcast %11 : vector<16x1xf32> to vector<16x128xf32>
    %13 = arith.subf %7, %12 : vector<16x128xf32>
    %14 = tpu.iota {dimensions = array<i32: 1>} : vector<16x128xi32>
    %c32_i32 = arith.constant 32 : i32
    %15 = vector.broadcast %c32_i32 : i32 to vector<16x128xi32>
    %16 = arith.cmpi slt, %14, %15 : vector<16x128xi32>
    %cst_9 = arith.constant 0.000000e+00 : f32
    %17 = vector.broadcast %cst_9 : f32 to vector<16x128xf32>
    %18 = arith.select %16, %13, %17 : vector<16x128xi1>, vector<16x128xf32>
    %19 = arith.mulf %18, %18 : vector<16x128xf32>
    %cst_10 = arith.constant dense<0.000000e+00> : vector<16xf32>
    %20 = vector.multi_reduction <add>, %19, %cst_10 [1] : vector<16x128xf32> to vector<16xf32>
    %21 = vector.shape_cast %20 : vector<16xf32> to vector<16x1xf32>
    %cst_11 = arith.constant 3.125000e-02 : f32
    %22 = vector.broadcast %cst_11 : f32 to vector<16x1xf32>
    %23 = arith.mulf %21, %22 : vector<16x1xf32>
    %cst_12 = arith.constant 1.000000e-10 : f32
    %24 = vector.broadcast %cst_12 : f32 to vector<16x1xf32>
    %25 = arith.addf %23, %24 : vector<16x1xf32>
    %26 = math.rsqrt %25 : vector<16x1xf32>
    %27 = vector.broadcast %26 : vector<16x1xf32> to vector<16x128xf32>
    %28 = arith.mulf %18, %27 : vector<16x128xf32>
    %c0_13 = arith.constant 0 : index
    %c0_14 = arith.constant 0 : index
    %29 = vector.load %arg5[%c0_13, %c0_14] : memref<1x128xf32, #tpu.memory_space<vmem>>, vector<1x128xf32>
    %30 = vector.broadcast %29 : vector<1x128xf32> to vector<16x128xf32>
    %31 = arith.mulf %28, %30 : vector<16x128xf32>
    %c0_15 = arith.constant 0 : index
    %c0_16 = arith.constant 0 : index
    %32 = vector.load %arg6[%c0_15, %c0_16] : memref<1x128xf32, #tpu.memory_space<vmem>>, vector<1x128xf32>
    %33 = vector.broadcast %32 : vector<1x128xf32> to vector<16x128xf32>
    %34 = arith.addf %31, %33 : vector<16x128xf32>
    %c0_17 = arith.constant 0 : index
    %c0_18 = arith.constant 0 : index
    %35 = vector.load %arg7[%c0_17, %c0_18] : memref<16x128xf32, #tpu.memory_space<vmem>>, vector<16x128xf32>
    tpu.vector_store %arg7[%c0_17, %c0_18], %34 {strides = array<i32>} : memref<16x128xf32, #tpu.memory_space<vmem>>, vector<16x128xf32>,
    return
  }
  func.func @transform_0(%arg0: i32) -> (i32, i32) {
    %c0_i32 = arith.constant 0 : i32
    %c0_i32_0 = arith.constant 0 : i32
    return %arg0, %c0_i32 : i32, i32
  }
  func.func @transform_1(%arg0: i32) -> (i32, i32) {
    %c0_i32 = arith.constant 0 : i32
    %c0_i32_0 = arith.constant 0 : i32
    return %arg0, %c0_i32 : i32, i32
  }
  func.func @transform_2(%arg0: i32) -> (i32, i32) {
    %c0_i32 = arith.constant 0 : i32
    %c0_i32_0 = arith.constant 0 : i32
    %c0_i32_1 = arith.constant 0 : i32
    return %c0_i32, %c0_i32_0 : i32, i32
  }
  func.func @transform_3(%arg0: i32) -> (i32, i32) {
    %c0_i32 = arith.constant 0 : i32
    %c0_i32_0 = arith.constant 0 : i32
    %c0_i32_1 = arith.constant 0 : i32
    return %c0_i32, %c0_i32_0 : i32, i32
  }
  func.func @transform_4(%arg0: i32) -> (i32, i32) {
    %c0_i32 = arith.constant 0 : i32
    %c0_i32_0 = arith.constant 0 : i32
    %c0_i32_1 = arith.constant 0 : i32
    return %c0_i32, %c0_i32_0 : i32, i32
  }
  func.func @transform_5(%arg0: i32) -> (i32, i32) {
    %c0_i32 = arith.constant 0 : i32
    %c0_i32_0 = arith.constant 0 : i32
    %c0_i32_1 = arith.constant 0 : i32
    return %c0_i32, %c0_i32_0 : i32, i32
  }
  func.func @transform_6(%arg0: i32) -> (i32, i32) {
    %c0_i32 = arith.constant 0 : i32
    %c0_i32_0 = arith.constant 0 : i32
    return %arg0, %c0_i32 : i32, i32
  }
}

</mosaic_0001>

<llo_original>
// kernel: bert_residual_output.1
$region0: #{bert_residual_output.1}
  #allocation0 [shape = 'u32[]', space=smem, size = 0x4, offset = 0x4, fixed_abs, tag = 'smem constant byte address 0x4 - core index']
  #allocation1 [shape = 'u32[144,128]{1,0:T(1,128)}', space=vmem, size = 0x12000, scoped, tag = 'internal scratch']
  %s0 = inlined_call_operand.vmem [shape: f32[16,128], index: 0, kind: input, shape index: {}]
  %s1 = inlined_call_operand.vmem [shape: f32[16,128], index: 1, kind: input, shape index: {}]
  %s2 = inlined_call_operand.vmem [shape: f32[128,128], index: 2, kind: input, shape index: {}]
  %s3 = inlined_call_operand.vmem [shape: f32[1,128], index: 3, kind: input, shape index: {}]
  %s4 = inlined_call_operand.vmem [shape: f32[1,128], index: 4, kind: input, shape index: {}]
  %s5 = inlined_call_operand.vmem [shape: f32[1,128], index: 5, kind: input, shape index: {}]
  %s6 = inlined_call_operand.vmem [shape: f32[16,128], index: 6, kind: output, shape index: {}]
  %s7 = sld [smem:[#allocation0]]
  $region34: #{bert_residual_output.1} parent=0
    _
  %s9 = ssub.s32 1, %s7
  %s10 = scalar_select 0, %s9, %s7
  // Predicated region
  $region2: #{bert_residual_output.1} parent=0 // pred_check
    _
  $region3: #{bert_residual_output.1} parent=0 // pred_check_branch
    %12 = sbr.rel (0) target = $region5
  $region4: #{bert_residual_output.1} parent=0 // pred_region
    _
  $region5: #{bert_residual_output.1} parent=0 // pred_fallthru
    _
  // Predicated region
  $region6: #{bert_residual_output.1} parent=0 // pred_check
    _
  $region7: #{bert_residual_output.1} parent=0 // pred_check_branch
    %14 = sbr.rel (0) target = $region9
  $region8: #{bert_residual_output.1} parent=0 // pred_region
    _
  $region9: #{bert_residual_output.1} parent=0 // pred_fallthru
    _
  // Predicated region
  $region10: #{bert_residual_output.1} parent=0 // pred_check
    _
  $region11: #{bert_residual_output.1} parent=0 // pred_check_branch
    %16 = sbr.rel (0) target = $region13
  $region12: #{bert_residual_output.1} parent=0 // pred_region
    _
  $region13: #{bert_residual_output.1} parent=0 // pred_fallthru
    _
  // Predicated region
  $region14: #{bert_residual_output.1} parent=0 // pred_check
    _
  $region15: #{bert_residual_output.1} parent=0 // pred_check_branch
    %18 = sbr.rel (0) target = $region17
  $region16: #{bert_residual_output.1} parent=0 // pred_region
    _
  $region17: #{bert_residual_output.1} parent=0 // pred_fallthru
    _
  // Predicated region
  $region18: #{bert_residual_output.1} parent=0 // pred_check
    _
  $region19: #{bert_residual_output.1} parent=0 // pred_check_branch
    %20 = sbr.rel (0) target = $region21
  $region20: #{bert_residual_output.1} parent=0 // pred_region
    _
  $region21: #{bert_residual_output.1} parent=0 // pred_fallthru
    _
  // Predicated region
  $region22: #{bert_residual_output.1} parent=0 // pred_check
    _
  $region23: #{bert_residual_output.1} parent=0 // pred_check_branch
    %22 = sbr.rel (0) target = $region25
  $region24: #{bert_residual_output.1} parent=0 // pred_region
    _
  $region25: #{bert_residual_output.1} parent=0 // pred_fallthru
    _
  %v23 = vld [vmem:[%s0] sm:$0xff]
  %v24 = vld [vmem:[%s0 + $0x8] sm:$0xff]
  %v25 = vld [vmem:[%s2] sm:$0xff]
  %v26 = vld [vmem:[%s2 + $0x8] sm:$0xff]
  %v27 = vld [vmem:[%s2 + $0x10] sm:$0xff]
  %v28 = vld [vmem:[%s2 + $0x18] sm:$0xff]
  %v29 = vld [vmem:[%s2 + $0x20] sm:$0xff]
  %v30 = vld [vmem:[%s2 + $0x28] sm:$0xff]
  %v31 = vld [vmem:[%s2 + $0x30] sm:$0xff]
  %v32 = vld [vmem:[%s2 + $0x38] sm:$0xff]
  %v33 = vld [vmem:[%s2 + $0x40] sm:$0xff]
  %v34 = vld [vmem:[%s2 + $0x48] sm:$0xff]
  %v35 = vld [vmem:[%s2 + $0x50] sm:$0xff]
  %v36 = vld [vmem:[%s2 + $0x58] sm:$0xff]
  %v37 = vld [vmem:[%s2 + $0x60] sm:$0xff]
  %v38 = vld [vmem:[%s2 + $0x68] sm:$0xff]
  %v39 = vld [vmem:[%s2 + $0x70] sm:$0xff]
  %v40 = vld [vmem:[%s2 + $0x78] sm:$0xff]
  %v41 = vld [vmem:[%s1] sm:$0xff]
  %v42 = vld [vmem:[%s1 + $0x8] sm:$0xff]
  %43 = vmatprep.subr.mxu0 0.0
  %44 = vmatpush1.msra.mxu0 %v40
  %45 = vmatprep.subr.mxu0 0.0
  %46 = vmatpush1.msra.mxu0 %v39
  %47 = vmatprep.subr.mxu0 0.0
  %48 = vmatpush1.msra.mxu0 %v38
  %49 = vmatprep.subr.mxu0 0.0
  %50 = vmatpush1.msra.mxu0 %v37
  %51 = vmatprep.subr.mxu0 0.0
  %52 = vmatpush1.msra.mxu0 %v36
  %53 = vmatprep.subr.mxu0 0.0
  %54 = vmatpush1.msra.mxu0 %v35
  %55 = vmatprep.subr.mxu0 0.0
  %56 = vmatpush1.msra.mxu0 %v34
  %57 = vmatprep.subr.mxu0 0.0
  %58 = vmatpush1.msra.mxu0 %v33
  %59 = vmatprep.subr.mxu0 0.0
  %60 = vmatpush1.msra.mxu0 %v32
  %61 = vmatprep.subr.mxu0 0.0
  %62 = vmatpush1.msra.mxu0 %v31
  %63 = vmatprep.subr.mxu0 0.0
  %64 = vmatpush1.msra.mxu0 %v30
  %65 = vmatprep.subr.mxu0 0.0
  %66 = vmatpush1.msra.mxu0 %v29
  %67 = vmatprep.subr.mxu0 0.0
  %68 = vmatpush1.msra.mxu0 %v28
  %69 = vmatprep.subr.mxu0 0.0
  %70 = vmatpush1.msra.mxu0 %v27
  %71 = vmatprep.subr.mxu0 0.0
  %72 = vmatpush1.msra.mxu0 %v26
  %73 = vmatprep.subr.mxu0 0.0
  %74 = vmatpush1.msra.mxu0 %v25
  %75 = vmatprep.subr.mxu0 0.0
  %76 = vmatpush2.msra.mxu0 0.0
  %77 = vmatprep.subr.mxu0 0.0
  %78 = vmatpush2.msra.mxu0 0.0
  %79 = vmatprep.subr.mxu0 0.0
  %80 = vmatpush2.msra.mxu0 0.0
  %81 = vmatprep.subr.mxu0 0.0
  %82 = vmatpush2.msra.mxu0 0.0
  %83 = vmatprep.subr.mxu0 0.0
  %84 = vmatpush2.msra.mxu0 0.0
  %85 = vmatprep.subr.mxu0 0.0
  %86 = vmatpush2.msra.mxu0 0.0
  %87 = vmatprep.subr.mxu0 0.0
  %88 = vmatpush2.msra.mxu0 0.0
  %89 = vmatprep.subr.mxu0 0.0
  %90 = vmatpush2.msra.mxu0 0.0
  %91 = vmatprep.subr.mxu0 0.0
  %92 = vmatpush2.msra.mxu0 0.0
  %93 = vmatprep.subr.mxu0 0.0
  %94 = vmatpush2.msra.mxu0 0.0
  %95 = vmatprep.subr.mxu0 0.0
  %96 = vmatpush2.msra.mxu0 0.0
  %97 = vmatprep.subr.mxu0 0.0
  %98 = vmatpush2.msra.mxu0 0.0
  %99 = vmatprep.subr.mxu0 0.0
  %100 = vmatpush2.msra.mxu0 0.0
  %101 = vmatprep.subr.mxu0 0.0
  %102 = vmatpush2.msra.mxu0 0.0
  %103 = vmatprep.subr.mxu0 0.0
  %104 = vmatpush2.msra.mxu0 0.0
  %105 = vmatprep.subr.mxu0 0.0
  %106 = vmatpush2.msra.mxu0 0.0
  %107 = vmatprep.mubr.f32.mxu0 0.0
  %108 = vmatmul.mubr.f32.gmra.mxu0 %v23
  %v109 = vpop.f32.mrf.mxu0
  %v110 = vadd.f32 %v41, %v109
  %v111 = vpop.f32.mrf.mxu0
  %112 = vmatprep.mubr.f32.mxu0 0.0
  %113 = vmatmul.mubr.f32.gmra.mxu0 %v24
  %v114 = vpop.f32.mrf.mxu0
  %v115 = vadd.f32 %v42, %v114
  %v116 = vpop.f32.mrf.mxu0
  %117 = vdwg.mxu0
  %v118 = vld [vmem:[%s3] sm:$0x1]
  %v120 = vlaneseq
  %v121 = vshrl.u32 %v120, 7
  %v122 = vsub.s32 0, %v121
  %v123 = vrot.slane %v118, %v122
  %v125 = vadd.f32 %v110, %v123
  %v126 = vadd.f32 %v115, %v123
  %127 = vadd.xlane.f32.xlu0 %v125
  %v128 = vpop.xlane.xlu0 %127
  %129 = vadd.xlane.f32.xlu0 %v126
  %v130 = vpop.xlane.xlu0 %129
  %v131 = vmul.f32 %v128, 0.03125
  %v132 = vmul.f32 %v130, 0.03125
  %v133 = vsub.f32 %v125, %v131
  %v134 = vsub.f32 %v126, %v132
  %v135 = vlaneseq
  %v136 = vand.u32 %v135, 127
  %vm137 = vcmp.lt.s32.totalorder %v136, 32
  %v138 = vsel %vm137, %v133, 0.0
  %v139 = vsel %vm137, %v134, 0.0
  %v140 = vmul.f32 %v138, %v138
  %v141 = vmul.f32 %v139, %v139
  %142 = vadd.xlane.f32.xlu0 %v140
  %v143 = vpop.xlane.xlu0 %142
  %144 = vadd.xlane.f32.xlu0 %v141
  %v145 = vpop.xlane.xlu0 %144
  %v146 = vmul.f32 %v143, 0.03125
  %v147 = vmul.f32 %v145, 0.03125
  %v148 = vadd.f32 %v146, 1e-10
  %v149 = vadd.f32 %v147, 1e-10
  %v150 = vrsqrt.pop %v148
  %v151 = vrsqrt.pop %v149
  %v152 = vmul.f32 %v138, %v150
  %v153 = vmul.f32 %v139, %v151
  %v154 = vld [vmem:[%s4] sm:$0x1]
  %v156 = vlaneseq
  %v157 = vshrl.u32 %v156, 7
  %v158 = vsub.s32 0, %v157
  %v159 = vrot.slane %v154, %v158
  %v161 = vmul.f32 %v152, %v159
  %v162 = vmul.f32 %v153, %v159
  %v163 = vld [vmem:[%s5] sm:$0x1]
  %v165 = vlaneseq
  %v166 = vshrl.u32 %v165, 7
  %v167 = vsub.s32 0, %v166
  %v168 = vrot.slane %v163, %v167
  %v170 = vadd.f32 %v161, %v168
  %v171 = vadd.f32 %v162, %v168
  %172 = vst [vmem:[%s6] sm:$0xff] %v170
  %173 = vst [vmem:[%s6 + $0x8] sm:$0xff] %v171
  // Predicated region
  $region26: #{bert_residual_output.1} parent=0 // pred_check
    _
  $region27: #{bert_residual_output.1} parent=0 // pred_check_branch
    %175 = sbr.rel (0) target = $region29
  $region28: #{bert_residual_output.1} parent=0 // pred_region
    _
  $region29: #{bert_residual_output.1} parent=0 // pred_fallthru
    _
  // Predicated region
  $region30: #{bert_residual_output.1} parent=0 // pred_check
    _
  $region31: #{bert_residual_output.1} parent=0 // pred_check_branch
    %177 = sbr.rel (0) target = $region33
  $region32: #{bert_residual_output.1} parent=0 // pred_region
    _
  $region33: #{bert_residual_output.1} parent=0 // pred_fallthru
    _

</llo_original>
